<compile_context>
chip_gen: v5e
topology: v5e:2x2
jax: 0.10.0
libtpu: 0.0.40
codegen_flags: <defaults>
</compile_context>

<pallas_src>
import jax
import jax.numpy as jnp
from jax import lax
from jax.experimental import pallas as pl
from jax.experimental.pallas import tpu as pltpu

HIDDEN = 64            # hidden width of each sub-net
FUSED_H = 3 * HIDDEN   # 192 fused hidden width
OUT_W = 8              # packed output rows: [logit, int_a, int_b, bg_a, bg_b, 0, 0, 0]
EPS = 1e-6


# ----------------------------- kernel ---------------------------------------

def confidence_kernel(x_ref, w1_ref, b1_ref, w2_ref, b2_ref, out_ref):
    # First layer: bf16 x @ bf16 W1 on the MXU, f32 accumulation.
    h = jnp.dot(x_ref[...], w1_ref[...],
                preferred_element_type=jnp.float32) + b1_ref[...]
    h = jnp.maximum(h, 0.0)

    # Second, block-diagonal fused layer (tiny): (bm, 192) @ (192, 8), f32.
    raw = jnp.dot(h, w2_ref[...],
                  preferred_element_type=jnp.float32) + b2_ref[...]     # (bm, 8)

    # Lane-dense transposed output (8, bm): full-width stores / writeback DMA.
    raw_t = raw.T                                                       # (8, bm)
    row = lax.broadcasted_iota(jnp.int32, raw_t.shape, 0)
    # Row 0 = raw signal logit; rows 1..4 = softplus(.) + eps; rows 5..7 = pad.
    act = jnp.where(row == 0, raw_t, jax.nn.softplus(raw_t) + EPS)
    out_ref[...] = jnp.where(row < 5, act, 0.0)


# --------------------------- parameters -------------------------------------

def init_params(key, dmodel):
    """Deterministic parameter init (shapes match the PyTorch module)."""
    ks = jax.random.split(key, 12)
    scale_in = 1.0 / jnp.sqrt(jnp.float32(dmodel))
    scale_h = 1.0 / jnp.sqrt(jnp.float32(HIDDEN))

    def lin(kw, kb, fan_in, fan_out, scale):
        w = jax.random.uniform(kw, (fan_in, fan_out), jnp.float32, -scale, scale)
        b = jax.random.uniform(kb, (1, fan_out), jnp.float32, -scale, scale)
        return w, b

    w1s, b1s = lin(ks[0], ks[1], dmodel, HIDDEN, scale_in)
    w2s, b2s = lin(ks[2], ks[3], HIDDEN, 1, scale_h)
    w1i, b1i = lin(ks[4], ks[5], dmodel, HIDDEN, scale_in)
    w2i, b2i = lin(ks[6], ks[7], HIDDEN, 2, scale_h)
    w1b, b1b = lin(ks[8], ks[9], dmodel, HIDDEN, scale_in)
    w2b, b2b = lin(ks[10], ks[11], HIDDEN, 2, scale_h)
    return dict(w1s=w1s, b1s=b1s, w2s=w2s, b2s=b2s,
                w1i=w1i, b1i=b1i, w2i=w2i, b2i=b2i,
                w1b=w1b, b1b=b1b, w2b=w2b, b2b=b2b)


def pack_params(p):
    """Fuse 3 sub-nets: one (D,192) first layer + block-diagonal (192,8) second layer.
    Output columns: 0 = signal logit, 1:3 = intensity params, 3:5 = background params."""
    w1 = jnp.concatenate([p["w1s"], p["w1i"], p["w1b"]], axis=1)        # (D, 192)
    b1 = jnp.concatenate([p["b1s"], p["b1i"], p["b1b"]], axis=1)        # (1, 192)
    w2 = jnp.zeros((FUSED_H, OUT_W), jnp.float32)
    w2 = w2.at[0:HIDDEN, 0:1].set(p["w2s"])
    w2 = w2.at[HIDDEN:2 * HIDDEN, 1:3].set(p["w2i"])
    w2 = w2.at[2 * HIDDEN:3 * HIDDEN, 3:5].set(p["w2b"])
    b2 = jnp.zeros((1, OUT_W), jnp.float32)
    b2 = b2.at[:, 0:1].set(p["b2s"])
    b2 = b2.at[:, 1:3].set(p["b2i"])
    b2 = b2.at[:, 3:5].set(p["b2b"])
    return w1, b1, w2, b2


# --------------------------- tiling / HW query -------------------------------

def _tpu_hw():
    """(vmem_capacity_bytes, tensorcores_per_chip) with safe fallbacks."""
    capacity = 32 << 20          # conservative fallback (interpret mode / unknown)
    num_cores = 1
    try:
        info = pltpu.get_tpu_info()
        capacity = int(getattr(info, "vmem_capacity_bytes", capacity))
    except Exception:
        pass
    try:
        kind = (jax.devices()[0].device_kind or "").lower()
        if "v7" in kind:         # v7x: 2 TensorCores share the chip
            num_cores = 2
    except Exception:
        pass
    return capacity, num_cores


def _choose_bm(B, D, capacity, num_cores):
    """Largest batch tile that fits a ~70%-of-VMEM tiling budget.
    Rounds to 128 (lane-dense transposed output block) and only forces >=2
    grid steps on chips with 2 TensorCores."""
    budget = int(capacity * 0.7)
    # Weights are resident (constant index_map) but still double-buffered.
    weight_bytes = 2 * (D * FUSED_H * 2            # w1 (bf16)
                        + FUSED_H * 4              # b1
                        + FUSED_H * OUT_W * 4      # w2
                        + OUT_W * 4)               # b2
    avail = max(budget - weight_bytes, 1 << 20)
    # Per batch-row VMEM: double-buffered bf16 x row + double-buffered f32 out col.
    bytes_per_row = 2 * (D * 2) + 2 * (OUT_W * 4)
    bm = avail // bytes_per_row
    if num_cores >= 2 and B >= 256:
        # Two (near-)equal tiles so both TensorCores get work.
        bm = min(bm, pl.cdiv(pl.cdiv(B, num_cores), 128) * 128)
    if bm >= B:
        return int(B)
    bm = max((bm // 128) * 128, 128)     # out block (8, bm) needs bm % 128 == 0
    return int(min(bm, B))


# ----------------------------- forward ---------------------------------------

def confidence_integrator_forward(representation, params, key, temperature=0.1):
    B, D = representation.shape
    capacity, num_cores = _tpu_hw()
    bm = _choose_bm(B, D, capacity, num_cores)
    grid = (pl.cdiv(B, bm),)
    vmem_limit = max(int(capacity * 0.9), 32 << 20)

    w1, b1, w2, b2 = pack_params(params)
    x_bf16 = representation.astype(jnp.bfloat16)
    w1_bf16 = w1.astype(jnp.bfloat16)

    in_specs = [
        pl.BlockSpec((bm, D), lambda i: (i, 0)),             # x tile (bf16)
        pl.BlockSpec((D, FUSED_H), lambda i: (0, 0)),        # fused W1 (bf16, resident)
        pl.BlockSpec((1, FUSED_H), lambda i: (0, 0)),        # fused b1
        pl.BlockSpec((FUSED_H, OUT_W), lambda i: (0, 0)),    # block-diag W2
        pl.BlockSpec((1, OUT_W), lambda i: (0, 0)),          # fused b2
    ]
    out_spec = pl.BlockSpec((OUT_W, bm), lambda i: (0, i))   # lane-dense transposed slab

    packed_t = pl.pallas_call(
        confidence_kernel,
        out_shape=jax.ShapeDtypeStruct((OUT_W, B), jnp.float32),
        grid_spec=pltpu.PrefetchScalarGridSpec(
            num_scalar_prefetch=0,
            grid=grid,
            in_specs=in_specs,
            out_specs=out_spec,
        ),
        compiler_params=pltpu.CompilerParams(
            dimension_semantics=("parallel",),
            vmem_limit_bytes=vmem_limit,
        ),
    )(x_bf16, w1_bf16, b1, w2, b2)

    signal_logit = packed_t[0][:, None]                      # (B, 1)
    int_alpha, int_beta = packed_t[1], packed_t[2]           # (B,)
    bg_alpha, bg_beta = packed_t[3], packed_t[4]             # (B,)

    key_n, key_g = jax.random.split(key)

    # RelaxedBernoulli(temperature, logits).rsample(): sigmoid((logit + L) / T),
    # L ~ Logistic(0,1). It's an O(B) op on the (B,1) logits, done host-side so
    # the kernel stays free of TPU-only PRNG primitives.
    logistic = jax.random.logistic(key_n, signal_logit.shape, dtype=jnp.float32)
    z_sample = jax.nn.sigmoid((signal_logit + logistic) / temperature)

    # TODO(synk): Gamma.rsample uses a rejection sampler (Marsaglia–Tsang) with no
    # clean Pallas equivalent; drawn here with jax.random.gamma (rate param -> divide).
    I_sample = jax.random.gamma(key_g, int_alpha) / int_beta
    effective_signal_intensity = z_sample * I_sample[:, None]

    q_z = {"temperature": temperature, "logits": signal_logit}
    qI = {"concentration": int_alpha, "rate": int_beta}
    q_bg = {"concentration": bg_alpha, "rate": bg_beta}
    return q_z, qI, q_bg, effective_signal_intensity


# ------------------------------- demo ----------------------------------------

if __name__ == "__main__":
    B, D = 8, 32
    root = jax.random.PRNGKey(0)
    k_param, k_data, k_sample = jax.random.split(root, 3)

    params = init_params(k_param, D)
    representation = jax.random.normal(k_data, (B, D), dtype=jnp.float32)

    q_z, qI, q_bg, effective = confidence_integrator_forward(
        representation, params, k_sample, temperature=0.1)

    jax.block_until_ready((q_z["logits"], qI["concentration"], qI["rate"],
                           q_bg["concentration"], q_bg["rate"], effective))

    assert q_z["logits"].shape == (B, 1)
    assert qI["concentration"].shape == (B,) and qI["rate"].shape == (B,)
    assert q_bg["concentration"].shape == (B,) and q_bg["rate"].shape == (B,)
    assert effective.shape == (B, 1)
    assert bool(jnp.all(qI["concentration"] > 0)) and bool(jnp.all(qI["rate"] > 0))
    assert bool(jnp.all(q_bg["concentration"] > 0)) and bool(jnp.all(q_bg["rate"] > 0))
    assert bool(jnp.all(jnp.isfinite(q_z["logits"])))
    assert bool(jnp.all(effective >= 0))

    print("KERNEL_OK")
</pallas_src>

<mosaic_0001>
module attributes {stable_mosaic.version = 11 : i64} {
  func.func @confidence_kernel(%arg0: i32, %arg1: memref<8x32xbf16, #tpu.memory_space<vmem>>, %arg2: memref<32x192xbf16, #tpu.memory_space<vmem>>, %arg3: memref<1x192xf32, #tpu.memory_space<vmem>>, %arg4: memref<192x8xf32, #tpu.memory_space<vmem>>, %arg5: memref<1x8xf32, #tpu.memory_space<vmem>>, %arg6: memref<8x8xf32, #tpu.memory_space<vmem>>) attributes {dimension_semantics = [#tpu.dimension_semantics<parallel>], iteration_bounds = array<i64: 1>, scalar_prefetch = 0 : i64, scratch_operands = 0 : i64, tpu.core_type = #tpu.core_type<tc>, window_params = [{transform_indices = @transform_0, window_bounds = array<i64: 8, 32>}, {pipeline_mode = #tpu.pipeline_mode<synchronous>, transform_indices = @transform_1, window_bounds = array<i64: 32, 192>}, {pipeline_mode = #tpu.pipeline_mode<synchronous>, transform_indices = @transform_2, window_bounds = array<i64: 1, 192>}, {pipeline_mode = #tpu.pipeline_mode<synchronous>, transform_indices = @transform_3, window_bounds = array<i64: 192, 8>}, {pipeline_mode = #tpu.pipeline_mode<synchronous>, transform_indices = @transform_4, window_bounds = array<i64: 1, 8>}, {transform_indices = @transform_5, window_bounds = array<i64: 8, 8>}]} {
    %c0 = arith.constant 0 : index
    %c0_0 = arith.constant 0 : index
    %0 = vector.load %arg1[%c0, %c0_0] : memref<8x32xbf16, #tpu.memory_space<vmem>>, vector<8x32xbf16>
    %c0_1 = arith.constant 0 : index
    %c0_2 = arith.constant 0 : index
    %1 = vector.load %arg2[%c0_1, %c0_2] : memref<32x192xbf16, #tpu.memory_space<vmem>>, vector<32x192xbf16>
    %cst = arith.constant dense<0.000000e+00> : vector<8x192xf32>
    %2 = tpu.matmul %0, %1, %cst {dimension_numbers = #tpu.dot_dimension_numbers<[1], [0], [0], [1], [0, 0, 1, 1], [], []>} : vector<8x32xbf16>, vector<32x192xbf16>, vector<8x192xf32> -> vector<8x192xf32>
    %c0_3 = arith.constant 0 : index
    %c0_4 = arith.constant 0 : index
    %3 = vector.load %arg3[%c0_3, %c0_4] : memref<1x192xf32, #tpu.memory_space<vmem>>, vector<1x192xf32>
    %4 = vector.broadcast %3 : vector<1x192xf32> to vector<8x192xf32>
    %5 = arith.addf %2, %4 : vector<8x192xf32>
    %cst_5 = arith.constant 0.000000e+00 : f32
    %6 = vector.broadcast %cst_5 : f32 to vector<8x192xf32>
    %7 = arith.maximumf %5, %6 : vector<8x192xf32>
    %c0_6 = arith.constant 0 : index
    %c0_7 = arith.constant 0 : index
    %8 = vector.load %arg4[%c0_6, %c0_7] : memref<192x8xf32, #tpu.memory_space<vmem>>, vector<192x8xf32>
    %cst_8 = arith.constant dense<0.000000e+00> : vector<8x8xf32>
    %9 = tpu.matmul %7, %8, %cst_8 {dimension_numbers = #tpu.dot_dimension_numbers<[1], [0], [0], [1], [0, 0, 1, 1], [], []>} : vector<8x192xf32>, vector<192x8xf32>, vector<8x8xf32> -> vector<8x8xf32>
    %c0_9 = arith.constant 0 : index
    %c0_10 = arith.constant 0 : index
    %10 = vector.load %arg5[%c0_9, %c0_10] : memref<1x8xf32, #tpu.memory_space<vmem>>, vector<1x8xf32>
    %11 = vector.broadcast %10 : vector<1x8xf32> to vector<8x8xf32>
    %12 = arith.addf %9, %11 : vector<8x8xf32>
    %13 = tpu.transpose %12, [1, 0] : vector<8x8xf32> -> vector<8x8xf32>
    %14 = tpu.iota {dimensions = array<i32: 0>} : vector<8x8xi32>
    %c0_i32 = arith.constant 0 : i32
    %15 = vector.broadcast %c0_i32 : i32 to vector<8x8xi32>
    %16 = arith.cmpi eq, %14, %15 : vector<8x8xi32>
    %cst_11 = arith.constant 0.000000e+00 : f32
    %17 = vector.broadcast %cst_11 : f32 to vector<8x8xf32>
    %18 = arith.maximumf %13, %17 : vector<8x8xf32>
    %19 = vector.broadcast %cst_11 : f32 to vector<8x8xf32>
    %20 = arith.subf %13, %19 : vector<8x8xf32>
    %21 = arith.cmpf one, %20, %20 : vector<8x8xf32>
    %22 = vector.broadcast %cst_11 : f32 to vector<8x8xf32>
    %23 = arith.addf %13, %22 : vector<8x8xf32>
    %24 = math.absf %20 : vector<8x8xf32>
    %cst_12 = arith.constant 0.000000e+00 : f32
    %25 = vector.broadcast %cst_12 : f32 to vector<8x8xf32>
    %26 = arith.subf %25, %24 : vector<8x8xf32>
    %27 = math.exp %26 : vector<8x8xf32>
    %28 = math.log1p %27 : vector<8x8xf32>
    %29 = arith.addf %18, %28 : vector<8x8xf32>
    %30 = arith.select %21, %23, %29 : vector<8x8xi1>, vector<8x8xf32>
    %cst_13 = arith.constant 9.99999997E-7 : f32
    %31 = vector.broadcast %cst_13 : f32 to vector<8x8xf32>
    %32 = arith.addf %30, %31 : vector<8x8xf32>
    %33 = arith.select %16, %13, %32 : vector<8x8xi1>, vector<8x8xf32>
    %c5_i32 = arith.constant 5 : i32
    %34 = vector.broadcast %c5_i32 : i32 to vector<8x8xi32>
    %35 = arith.cmpi slt, %14, %34 : vector<8x8xi32>
    %cst_14 = arith.constant 0.000000e+00 : f32
    %36 = vector.broadcast %cst_14 : f32 to vector<8x8xf32>
    %37 = arith.select %35, %33, %36 : vector<8x8xi1>, vector<8x8xf32>
    %c0_15 = arith.constant 0 : index
    %c0_16 = arith.constant 0 : index
    %38 = vector.load %arg6[%c0_15, %c0_16] : memref<8x8xf32, #tpu.memory_space<vmem>>, vector<8x8xf32>
    tpu.vector_store %arg6[%c0_15, %c0_16], %37 {strides = array<i32>} : memref<8x8xf32, #tpu.memory_space<vmem>>, vector<8x8xf32>,
    return
  }
  func.func @transform_0(%arg0: i32) -> (i32, i32) {
    %c0_i32 = arith.constant 0 : i32
    %c0_i32_0 = arith.constant 0 : i32
    return %arg0, %c0_i32 : i32, i32
  }
  func.func @transform_1(%arg0: i32) -> (i32, i32) {
    %c0_i32 = arith.constant 0 : i32
    %c0_i32_0 = arith.constant 0 : i32
    %c0_i32_1 = arith.constant 0 : i32
    return %c0_i32, %c0_i32_0 : i32, i32
  }
  func.func @transform_2(%arg0: i32) -> (i32, i32) {
    %c0_i32 = arith.constant 0 : i32
    %c0_i32_0 = arith.constant 0 : i32
    %c0_i32_1 = arith.constant 0 : i32
    return %c0_i32, %c0_i32_0 : i32, i32
  }
  func.func @transform_3(%arg0: i32) -> (i32, i32) {
    %c0_i32 = arith.constant 0 : i32
    %c0_i32_0 = arith.constant 0 : i32
    %c0_i32_1 = arith.constant 0 : i32
    return %c0_i32, %c0_i32_0 : i32, i32
  }
  func.func @transform_4(%arg0: i32) -> (i32, i32) {
    %c0_i32 = arith.constant 0 : i32
    %c0_i32_0 = arith.constant 0 : i32
    %c0_i32_1 = arith.constant 0 : i32
    return %c0_i32, %c0_i32_0 : i32, i32
  }
  func.func @transform_5(%arg0: i32) -> (i32, i32) {
    %c0_i32 = arith.constant 0 : i32
    %c0_i32_0 = arith.constant 0 : i32
    return %c0_i32, %arg0 : i32, i32
  }
}

</mosaic_0001>

<llo_original>
// kernel: tpu_custom_call.1
$region0: #{tpu_custom_call.1}
  #allocation0 [shape = 'u32[]', space=smem, size = 0x4, offset = 0x4, fixed_abs, tag = 'smem constant byte address 0x4 - core index']
  #allocation1 [shape = 'u32[72,128]{1,0:T(1,128)}', space=vmem, size = 0x9000, scoped, tag = 'internal scratch']
  %s0 = inlined_call_operand.vmem [shape: bf16[8,32], index: 0, kind: input, shape index: {}]
  %s1 = inlined_call_operand.vmem [shape: bf16[32,192], index: 1, kind: input, shape index: {}]
  %s2 = inlined_call_operand.vmem [shape: f32[1,192], index: 2, kind: input, shape index: {}]
  %s3 = inlined_call_operand.vmem [shape: f32[192,8], index: 3, kind: input, shape index: {}]
  %s4 = inlined_call_operand.vmem [shape: f32[1,8], index: 4, kind: input, shape index: {}]
  %s5 = inlined_call_operand.hbm [shape: f32[8,8], index: 5, kind: output, shape index: {}]
  %s6 = sld [smem:[#allocation0]]
  $region30: #{tpu_custom_call.1} parent=0
    _
  %s8 = ssub.s32 1, %s6
  %s9 = scalar_select 0, %s8, %s6
  $region1: #{tpu_custom_call.1} parent=0
    #allocation2 [shape = 'u8[4096]{0}', space=vmem, size = 0x1000, scoped, tag = 'output window, operand 0, single buffered']
    #allocation3 [shape = 's32[1]{0}', space=sflag, size = 0x4, scoped, tag = 'scoped memory for tpu_custom_call.1']
    %10 = vsyncpa [#allocation3], 0
    // Predicated region
    $region2: #{tpu_custom_call.1} parent=1 // pred_check
      _
    $region3: #{tpu_custom_call.1} parent=1 // pred_check_branch
      %12 = sbr.rel (0) target = $region5
    $region4: #{tpu_custom_call.1} parent=1 // pred_region
      _
    $region5: #{tpu_custom_call.1} parent=1 // pred_fallthru
      _
    // Predicated region
    $region6: #{tpu_custom_call.1} parent=1 // pred_check
      _
    $region7: #{tpu_custom_call.1} parent=1 // pred_check_branch
      %14 = sbr.rel (0) target = $region9
    $region8: #{tpu_custom_call.1} parent=1 // pred_region
      _
    $region9: #{tpu_custom_call.1} parent=1 // pred_fallthru
      _
    // Predicated region
    $region10: #{tpu_custom_call.1} parent=1 // pred_check
      _
    $region11: #{tpu_custom_call.1} parent=1 // pred_check_branch
      %16 = sbr.rel (0) target = $region13
    $region12: #{tpu_custom_call.1} parent=1 // pred_region
      _
    $region13: #{tpu_custom_call.1} parent=1 // pred_fallthru
      _
    // Predicated region
    $region14: #{tpu_custom_call.1} parent=1 // pred_check
      _
    $region15: #{tpu_custom_call.1} parent=1 // pred_check_branch
      %18 = sbr.rel (0) target = $region17
    $region16: #{tpu_custom_call.1} parent=1 // pred_region
      _
    $region17: #{tpu_custom_call.1} parent=1 // pred_fallthru
      _
    // Predicated region
    $region18: #{tpu_custom_call.1} parent=1 // pred_check
      _
    $region19: #{tpu_custom_call.1} parent=1 // pred_check_branch
      %20 = sbr.rel (0) target = $region21
    $region20: #{tpu_custom_call.1} parent=1 // pred_region
      _
    $region21: #{tpu_custom_call.1} parent=1 // pred_fallthru
      _
    %v22 = vld [vmem:[%s0] sm:$0xf]
    %v23 = vld [vmem:[%s1] sm:$0xff]
    %v24 = vld [vmem:[%s1 + $0x8] sm:$0xff]
    %v25 = vld [vmem:[%s1 + $0x10] sm:$0xff]
    %v26 = vld [vmem:[%s1 + $0x18] sm:$0xff]
    %v27 = vld [vmem:[%s2] sm:$0x3]
    %v29 = vperm.slane %v27, 0
    %v30 = vperm.slane %v27, 1
    %v37 = vunpack.c.l.b16 %v23
    %v38 = vunpack.c.h.b16 %v23
    %v39 = vunpack.c.l.b16 %v24
    %v40 = vunpack.c.h.b16 %v24
    %v41 = vunpack.c.l.b16 %v25
    %v42 = vunpack.c.h.b16 %v25
    %v43 = vunpack.c.l.b16 %v26
    %v44 = vunpack.c.h.b16 %v26
    %v45 = vpack.c.b16 %v39, %v37
    %v46 = vpack.c.b16 %v40, %v38
    %v47 = vpack.c.b16 %v43, %v41
    %v48 = vpack.c.b16 %v44, %v42
    %vm53 = vcmask 261120
    %v55 = vsel %vm53, %v22, 0
    %57 = vmatpush.bf16.msra.mxu0 0
    %58 = vmatpush.bf16.msra.mxu0 0
    %59 = vmatpush.bf16.msra.mxu0 0
    %60 = vmatpush.bf16.msra.mxu0 0
    %61 = vmatpush.bf16.msra.mxu0 0
    %62 = vmatpush.bf16.msra.mxu0 0
    %63 = vmatpush.bf16.msra.mxu0 %v47
    %64 = vmatpush.bf16.msra.mxu0 %v45
    %65 = vmatmul.bf16.gmra.mxu0 %v55
    %v66 = vpop.f32.mrf.mxu0
    %v67 = vadd.f32 %v29, %v66
    %v68 = vpop.f32.mrf.mxu0
    %69 = vdwg.mxu0
    %70 = vmatpush.bf16.msra.mxu0 0
    %71 = vmatpush.bf16.msra.mxu0 0
    %72 = vmatpush.bf16.msra.mxu0 0
    %73 = vmatpush.bf16.msra.mxu0 0
    %74 = vmatpush.bf16.msra.mxu0 0
    %75 = vmatpush.bf16.msra.mxu0 0
    %76 = vmatpush.bf16.msra.mxu0 %v48
    %77 = vmatpush.bf16.msra.mxu0 %v46
    %78 = vmatmul.bf16.gmra.mxu0 %v55
    %v79 = vpop.f32.mrf.mxu0
    %v80 = vadd.f32 %v30, %v79
    %v81 = vpop.f32.mrf.mxu0
    %82 = vdwg.mxu0
    %v83 = vmax.f32 %v67, 0.0
    %v84 = vmax.f32 %v80, 0.0
    %v85 = vld [vmem:[%s3] sm:$0xff]
    %v86 = vld [vmem:[%s3 + $0x8] sm:$0xff]
    %v87 = vld [vmem:[%s3 + $0x10] sm:$0xff]
    %v88 = vld [vmem:[%s3 + $0x18] sm:$0xff]
    %v89 = vld [vmem:[%s3 + $0x20] sm:$0xff]
    %v90 = vld [vmem:[%s3 + $0x28] sm:$0xff]
    %v91 = vld [vmem:[%s3 + $0x30] sm:$0xff]
    %v92 = vld [vmem:[%s3 + $0x38] sm:$0xff]
    %v93 = vld [vmem:[%s3 + $0x40] sm:$0xff]
    %v94 = vld [vmem:[%s3 + $0x48] sm:$0xff]
    %v95 = vld [vmem:[%s3 + $0x50] sm:$0xff]
    %v96 = vld [vmem:[%s3 + $0x58] sm:$0xff]
    %v97 = vld [vmem:[%s3 + $0x60] sm:$0xff]
    %v98 = vld [vmem:[%s3 + $0x68] sm:$0xff]
    %v99 = vld [vmem:[%s3 + $0x70] sm:$0xff]
    %v100 = vld [vmem:[%s3 + $0x78] sm:$0xff]
    %v101 = vld [vmem:[%s3 + $0x80] sm:$0xff]
    %v102 = vld [vmem:[%s3 + $0x88] sm:$0xff]
    %v103 = vld [vmem:[%s3 + $0x90] sm:$0xff]
    %v104 = vld [vmem:[%s3 + $0x98] sm:$0xff]
    %v105 = vld [vmem:[%s3 + $0xa0] sm:$0xff]
    %v106 = vld [vmem:[%s3 + $0xa8] sm:$0xff]
    %v107 = vld [vmem:[%s3 + $0xb0] sm:$0xff]
    %v108 = vld [vmem:[%s3 + $0xb8] sm:$0xff]
    %v109 = vld [vmem:[%s4] sm:$0x1]
    %v111 = vperm.slane %v109, 0
    %vm113 = vcmask 523264
    %v115 = vsel %vm113, %v84, 0
    %117 = vmatpush.msra.mxu0 %v100
    %118 = vmatpush.msra.mxu0 %v99
    %119 = vmatpush.msra.mxu0 %v98
    %120 = vmatpush.msra.mxu0 %v97
    %121 = vmatpush.msra.mxu0 %v96
    %122 = vmatpush.msra.mxu0 %v95
    %123 = vmatpush.msra.mxu0 %v94
    %124 = vmatpush.msra.mxu0 %v93
    %125 = vmatpush.msra.mxu0 %v92
    %126 = vmatpush.msra.mxu0 %v91
    %127 = vmatpush.msra.mxu0 %v90
    %128 = vmatpush.msra.mxu0 %v89
    %129 = vmatpush.msra.mxu0 %v88
    %130 = vmatpush.msra.mxu0 %v87
    %131 = vmatpush.msra.mxu0 %v86
    %132 = vmatpush.msra.mxu0 %v85
    %133 = vmatmul.f32.gmra.mxu0 %v83
    %v134 = vpop.f32.mrf.mxu0
    %v135 = vadd.f32 %v111, %v134
    %136 = vdwg.mxu0
    %137 = vmatpush.msra.mxu0 0.0
    %138 = vmatpush.msra.mxu0 0.0
    %139 = vmatpush.msra.mxu0 0.0
    %140 = vmatpush.msra.mxu0 0.0
    %141 = vmatpush.msra.mxu0 0.0
    %142 = vmatpush.msra.mxu0 0.0
    %143 = vmatpush.msra.mxu0 0.0
    %144 = vmatpush.msra.mxu0 0.0
    %145 = vmatpush.msra.mxu0 %v108
    %146 = vmatpush.msra.mxu0 %v107
    %147 = vmatpush.msra.mxu0 %v106
    %148 = vmatpush.msra.mxu0 %v105
    %149 = vmatpush.msra.mxu0 %v104
    %150 = vmatpush.msra.mxu0 %v103
    %151 = vmatpush.msra.mxu0 %v102
    %152 = vmatpush.msra.mxu0 %v101
    %153 = vmatmul.f32.gmra.mxu0 %v115
    %v154 = vpop.f32.mrf.mxu0
    %v155 = vadd.f32 %v135, %v154
    %156 = vdwg.mxu0
    %157 = vxpose.xlu0.b32.start [1/16] %v155, 128
    %158 = vxpose.xlu0.b32.cont [2/16] 0.0, 128
    %159 = vxpose.xlu0.b32.cont [3/16] 0.0, 128
    %160 = vxpose.xlu0.b32.cont [4/16] 0.0, 128
    %161 = vxpose.xlu0.b32.cont [5/16] 0.0, 128
    %162 = vxpose.xlu0.b32.cont [6/16] 0.0, 128
    %163 = vxpose.xlu0.b32.cont [7/16] 0.0, 128
    %164 = vxpose.xlu0.b32.cont [8/16] 0.0, 128
    %165 = vxpose.xlu0.b32.cont [9/16] 0.0, 128
    %166 = vxpose.xlu0.b32.cont [10/16] 0.0, 128
    %167 = vxpose.xlu0.b32.cont [11/16] 0.0, 128
    %168 = vxpose.xlu0.b32.cont [12/16] 0.0, 128
    %169 = vxpose.xlu0.b32.cont [13/16] 0.0, 128
    %170 = vxpose.xlu0.b32.cont [14/16] 0.0, 128
    %171 = vxpose.xlu0.b32.cont [15/16] 0.0, 128
    %172 = vxpose.xlu0.b32.end [16/16] 0.0, 128
    %v173 = vpop.trf.xlu0
    %v174 = vpop.trf.xlu0
    %v175 = vpop.trf.xlu0
    %v176 = vpop.trf.xlu0
    %v177 = vpop.trf.xlu0
    %v178 = vpop.trf.xlu0
    %v179 = vpop.trf.xlu0
    %v180 = vpop.trf.xlu0
    %v181 = vpop.trf.xlu0
    %v182 = vpop.trf.xlu0
    %v183 = vpop.trf.xlu0
    %v184 = vpop.trf.xlu0
    %v185 = vpop.trf.xlu0
    %v186 = vpop.trf.xlu0
    %v187 = vpop.trf.xlu0
    %v188 = vpop.trf.xlu0
    %v189 = vlaneseq
    %v190 = vshrl.u32 %v189, 7
    %vm191 = vcmp.eq.s32.totalorder %v190, 0
    %v192 = vmax.f32 %v173, 0.0
    %vm193 = vcmp.ne.f32.partialorder %v173, %v173
    %v194 = vadd.f32 %v173, 0.0
    %v195 = vand.u32 2147483647, %v173
    %v196 = vsub.f32 0.0, %v195
    %v197 = vmul.f32 %v196, 1.442695
    %v198 = vpow.pop %v197
    %v199 = vadd.f32 %v198, 1.0
    %v200 = vlog2.pop %v199
    %v201 = vmul.f32 %v200, 0.6931472
    %v202 = vmul.f32 -0.5, %v198
    %v203 = vadd.f32 %v202, 1.0
    %v204 = vmul.f32 %v203, %v198
    %v205 = vand.u32 2147483647, %v198
    %vm206 = vcmp.lt.f32.partialorder %v205, 0.0004427343
    %v207 = vsel %vm206, %v204, %v201
    %v208 = vadd.f32 %v192, %v207
    %v209 = vsel %vm193, %v194, %v208
    %v210 = vadd.f32 %v209, 1e-06
    %v211 = vsel %vm191, %v173, %v210
    %vm212 = vcmp.lt.s32.totalorder %v190, 5
    %v213 = vsel %vm212, %v211, 0.0
    %vm214 = vcmask 64512
    %215 = vst.msk [vmem:[#allocation2] sm:$0xff] %vm214, %v213
    // Predicated region
    $region22: #{tpu_custom_call.1} parent=1 // pred_check
      _
    $region23: #{tpu_custom_call.1} parent=1 // pred_check_branch
      %217 = sbr.rel (0) target = $region25
    $region24: #{tpu_custom_call.1} parent=1 // pred_region
      %219 = vsyncadd [#allocation3], 0
      %s221 = sshll.u32 [#allocation2], 4
      %s222 = int_to_ptr.vmem [resolvable:$true] %s221
      %s223 = sshll.u32 %s5, 4
      %s224 = int_to_ptr.hbm [resolvable:$true] %s223
      %226 = dma.vmem_to_hbm [thread:$0]  %s222, 128, %s224, [#allocation3]
    $region25: #{tpu_custom_call.1} parent=1 // pred_fallthru
      _
    // Predicated region
    $region26: #{tpu_custom_call.1} parent=1 // pred_check
      _
    $region27: #{tpu_custom_call.1} parent=1 // pred_check_branch
      %228 = sbr.rel (0) target = $region29
    $region28: #{tpu_custom_call.1} parent=1 // pred_region
      %230 = dma.done [#allocation3], 128
    $region29: #{tpu_custom_call.1} parent=1 // pred_fallthru
      _
    %231 = vsyncpa [#allocation3], 1

</llo_original>
